<compile_context>
chip_gen: v6e
topology: v6e:2x2x1
jax: 0.10.0
libtpu: 0.0.40
codegen_flags: <defaults>
</compile_context>

<pallas_src>
import jax
import jax.numpy as jnp
from jax.experimental import pallas as pl
from jax.experimental.pallas import tpu as pltpu


def _isp_scatter_kernel(idx_ref, isp_ref, out_ref):
    # idx_ref: (tw, k)      int32 expert choice per window row (invalid = -1)
    # isp_ref: (k, tw, td)  candidate embeddings, dense (tw, td) slab per slot
    # out_ref: (te, tw, td) output slab for experts [e_base, e_base + te)
    te, tw, td = out_ref.shape
    k = idx_ref.shape[1]
    e_base = pl.program_id(2) * te

    idx = idx_ref[...]                               # tiny tile, load once
    cols = [idx[:, j:j + 1] for j in range(k)]       # k x (tw, 1)

    for el in range(te):                             # static unroll, te small
        e = e_base + el
        acc = jnp.zeros((tw, td), dtype=out_ref.dtype)
        for j in range(k):                           # ascending j: later j wins
            # Re-read the (tw, td) slab from VMEM each time: vld slots have
            # slack, while holding k slabs live across the unrolled te*k loop
            # would guarantee register spills.
            acc = jnp.where(cols[j] == e, isp_ref[j], acc)
        out_ref[el] = acc


def _round_up(x, m):
    return ((x + m - 1) // m) * m


def _pick_td(d_pad, cap):
    """Largest multiple of 128 that divides d_pad and is <= cap."""
    cap = max(128, (cap // 128) * 128)
    if d_pad <= cap:
        return d_pad
    t = cap
    while t >= 128:
        if d_pad % t == 0:
            return t
        t -= 128
    return 128


def _vmem_capacity_bytes():
    try:
        return int(pltpu.get_tpu_info().vmem_capacity_bytes)
    except Exception:
        return 64 * 2 ** 20  # conservative fallback (v7x per-TC VMEM)


def isp_parameter_generator(isp_per_win, expert_indices, num_experts, *,
                            tw=512, te_cap=8, td_cap=512):
    """Pallas implementation of ISPParameterGenerator.forward."""
    b, w, k, d = isp_per_win.shape
    nw = b * w
    num_experts = int(num_experts)

    idx = expert_indices.astype(jnp.int32)
    assert idx.shape == (nw, k), f"expert_indices shape {idx.shape} != ({nw}, {k})"

    # Clamp anything outside [0, num_experts) to the -1 sentinel (matches the
    # torch valid_mask) so experts padded into a partial expert tile can never
    # be selected.
    idx = jnp.where((idx >= 0) & (idx < num_experts), idx, jnp.int32(-1))

    # Lane-dense output: pad embed_dim to a multiple of 128 (sliced back off
    # afterwards) so output stores are full-width vst, not masked vst.msk.
    d_pad = max(128, _round_up(d, 128))

    dsize = jnp.dtype(isp_per_win.dtype).itemsize
    vmem_cap = _vmem_capacity_bytes()
    block_budget = vmem_cap // 2  # double-buffered blocks <= ~half of VMEM

    # Initial tiles, then shrink until the double-buffered footprint fits
    # (matters on v7x's 64 MiB/TC; 128 MiB v5e/v6e keep the big tiles).
    te = max(1, min(int(te_cap), num_experts))
    tw = max(8, min(_round_up(int(tw), 8), _round_up(nw, 8)))
    td = _pick_td(d_pad, int(td_cap))

    def _fp(tw_, te_, td_):
        return 2 * (tw_ * k * 4 + (k + te_) * tw_ * td_ * dsize)

    while _fp(tw, te, td) > block_budget:
        if te > 2:
            te = max(2, te // 2)
        elif tw > 256:
            tw = max(8, ((tw // 2) // 8) * 8)
        elif td > 128:
            td = _pick_td(d_pad, max(128, td // 2))
        elif te > 1:
            te = 1
        elif tw > 8:
            tw = max(8, ((tw // 2) // 8) * 8)
        else:
            break

    nw_pad = _round_up(nw, tw)
    # Pad ONLY the tiny idx array (with -1).  isp / output stay un-padded along
    # windows: garbage tail rows of the isp block are never selected (idx==-1)
    # and the partial output-block store is masked by Pallas.
    if nw_pad != nw:
        idx = jnp.pad(idx, ((0, nw_pad - nw), (0, 0)), constant_values=-1)

    # (k, nw, d_pad): dense (windows, embed) slab per expert slot.  The
    # transpose + lane pad is a small input-side copy; output traffic dominates.
    isp = jnp.transpose(isp_per_win.reshape(nw, k, d), (1, 0, 2))
    if d_pad != d:
        isp = jnp.pad(isp, ((0, 0), (0, 0), (0, d_pad - d)))

    grid = (nw_pad // tw, d_pad // td, pl.cdiv(num_experts, te))

    sb = tw * k * 4 + (k + te) * tw * td * dsize
    vmem_limit = int(min(vmem_cap * 3 // 4,
                         max(32 * 2 ** 20, 2 * sb + 16 * 2 ** 20)))

    bytes_accessed = (nw_pad * k * 4
                      + nw * k * d_pad * dsize
                      + num_experts * nw * d_pad * dsize)

    out = pl.pallas_call(
        _isp_scatter_kernel,
        out_shape=jax.ShapeDtypeStruct((num_experts, nw, d_pad), isp.dtype),
        grid_spec=pltpu.PrefetchScalarGridSpec(
            num_scalar_prefetch=0,
            grid=grid,
            in_specs=[
                # idx: independent of (d, expert) axes -> DMA'd once per
                # window tile and reused across all inner grid steps.
                pl.BlockSpec((tw, k), lambda wi, di, ei: (wi, 0)),
                # isp: independent of the (innermost) expert axis -> reused
                # across every expert tile of a (window, d) tile.
                pl.BlockSpec((k, tw, td), lambda wi, di, ei: (0, wi, di)),
            ],
            out_specs=pl.BlockSpec((te, tw, td), lambda wi, di, ei: (ei, wi, di)),
        ),
        compiler_params=pltpu.CompilerParams(
            # All blocks are independent (disjoint outputs, read-only inputs):
            # let megacore shard any axis (v7x: 2 TCs; no effect on v5e/v6e).
            dimension_semantics=("parallel", "parallel", "parallel"),
            vmem_limit_bytes=vmem_limit,
        ),
        cost_estimate=pl.CostEstimate(
            flops=0, transcendentals=0, bytes_accessed=int(bytes_accessed)),
    )(idx, isp)

    if d_pad != d:
        out = out[:, :, :d]
    return out


def _reference(isp_per_win, expert_indices, num_experts):
    """Pure-JAX reference mirroring torch index_put_ (last-write-wins)."""
    b, w, k, d = isp_per_win.shape
    nw = b * w
    isp = isp_per_win.reshape(nw, k, d)
    out = jnp.zeros((num_experts, nw, d), isp.dtype)
    rows = jnp.arange(nw)
    for j in range(k):
        e = expert_indices[:, j]
        valid = (e >= 0) & (e < num_experts)
        e_safe = jnp.where(valid, e, 0)
        cur = out[e_safe, rows]
        new = jnp.where(valid[:, None], isp[:, j], cur)
        out = out.at[e_safe, rows].set(new)
    return out


if __name__ == "__main__":
    def run_case(batches, windows, topk, embed_dim, num_experts, key, **kw):
        k_isp, k_idx = jax.random.split(key)
        nw = batches * windows
        isp_per_win = jax.random.normal(
            k_isp, (batches, windows, topk, embed_dim), dtype=jnp.float32)
        expert_indices = jax.random.randint(
            k_idx, (nw, topk), minval=-1, maxval=num_experts, dtype=jnp.int32)
        # Exercise the invalid-index paths: below range and at/above range.
        expert_indices = expert_indices.at[0, 0].set(num_experts + 3)
        expert_indices = expert_indices.at[1, 0].set(num_experts)

        out = isp_parameter_generator(
            isp_per_win, expert_indices, num_experts, **kw)
        out = jax.block_until_ready(out)

        ref = _reference(isp_per_win, expert_indices, num_experts)
        assert out.shape == (num_experts, nw, embed_dim)
        assert jnp.array_equal(out, ref), "mismatch vs reference"

    key = jax.random.PRNGKey(0)
    k1, k2, k3 = jax.random.split(key, 3)

    # Main case: embed_dim=32 -> lane-padded to 128 in-kernel, sliced back.
    run_case(2, 8, 2, 32, 4, k1)
    # Ragged windows (nw=21): multi-tile grid with a partial last window block
    # (masked store + -1 idx sentinel on the un-padded isp tail).
    run_case(3, 7, 3, 32, 5, k2, tw=8)
    # Multiple expert tiles with a partial last tile (10 % 4 = 2), embed_dim
    # padded 160->256, and two d tiles (td=128).
    run_case(2, 8, 2, 160, 10, k3, te_cap=4, td_cap=128)

    print("KERNEL_OK")
</pallas_src>

<mosaic_0001>
module attributes {stable_mosaic.version = 11 : i64} {
  func.func @_isp_scatter_kernel(%arg0: i32, %arg1: i32, %arg2: i32, %arg3: memref<16x2xi32, #tpu.memory_space<vmem>>, %arg4: memref<2x16x128xf32, #tpu.memory_space<vmem>>, %arg5: memref<4x16x128xf32, #tpu.memory_space<vmem>>) attributes {dimension_semantics = [#tpu.dimension_semantics<parallel>, #tpu.dimension_semantics<parallel>, #tpu.dimension_semantics<parallel>], iteration_bounds = array<i64: 1, 1, 1>, scalar_prefetch = 0 : i64, scratch_operands = 0 : i64, tpu.core_type = #tpu.core_type<tc>, window_params = [{transform_indices = @transform_0, window_bounds = array<i64: 16, 2>}, {transform_indices = @transform_1, window_bounds = array<i64: 2, 16, 128>}, {transform_indices = @transform_2, window_bounds = array<i64: 4, 16, 128>}]} {
    %c4_i32 = arith.constant 4 : i32
    %0 = arith.muli %arg2, %c4_i32 : i32
    %c0 = arith.constant 0 : index
    %c0_0 = arith.constant 0 : index
    %1 = vector.load %arg3[%c0, %c0_0] : memref<16x2xi32, #tpu.memory_space<vmem>>, vector<16x2xi32>
    %2 = vector.extract_strided_slice %1 {offsets = [0, 0], sizes = [16, 1], strides = [1, 1]} : vector<16x2xi32> to vector<16x1xi32>
    %3 = vector.extract_strided_slice %1 {offsets = [0, 1], sizes = [16, 1], strides = [1, 1]} : vector<16x2xi32> to vector<16x1xi32>
    %c0_i32 = arith.constant 0 : i32
    %4 = arith.addi %0, %c0_i32 : i32
    %cst = arith.constant 0.000000e+00 : f32
    %5 = vector.broadcast %cst : f32 to vector<16x128xf32>
    %6 = vector.broadcast %4 : i32 to vector<16x1xi32>
    %7 = arith.cmpi eq, %2, %6 : vector<16x1xi32>
    %c0_1 = arith.constant 0 : index
    %c0_2 = arith.constant 0 : index
    %c0_3 = arith.constant 0 : index
    %8 = vector.load %arg4[%c0_1, %c0_2, %c0_3] : memref<2x16x128xf32, #tpu.memory_space<vmem>>, vector<1x16x128xf32>
    %9 = vector.shape_cast %8 : vector<1x16x128xf32> to vector<16x128xf32>
    %10 = vector.shape_cast %7 : vector<16x1xi1> to vector<16x1xi1>
    %11 = vector.broadcast %10 : vector<16x1xi1> to vector<16x128xi1>
    %12 = arith.select %11, %9, %5 : vector<16x128xi1>, vector<16x128xf32>
    %13 = vector.broadcast %4 : i32 to vector<16x1xi32>
    %14 = arith.cmpi eq, %3, %13 : vector<16x1xi32>
    %c1 = arith.constant 1 : index
    %c0_4 = arith.constant 0 : index
    %c0_5 = arith.constant 0 : index
    %15 = vector.load %arg4[%c1, %c0_4, %c0_5] : memref<2x16x128xf32, #tpu.memory_space<vmem>>, vector<1x16x128xf32>
    %16 = vector.shape_cast %15 : vector<1x16x128xf32> to vector<16x128xf32>
    %17 = vector.shape_cast %14 : vector<16x1xi1> to vector<16x1xi1>
    %18 = vector.broadcast %17 : vector<16x1xi1> to vector<16x128xi1>
    %19 = arith.select %18, %16, %12 : vector<16x128xi1>, vector<16x128xf32>
    %c0_6 = arith.constant 0 : index
    %c0_7 = arith.constant 0 : index
    %c0_8 = arith.constant 0 : index
    %20 = vector.load %arg5[%c0_6, %c0_7, %c0_8] : memref<4x16x128xf32, #tpu.memory_space<vmem>>, vector<1x16x128xf32>
    %21 = vector.shape_cast %20 : vector<1x16x128xf32> to vector<16x128xf32>
    %22 = vector.shape_cast %19 : vector<16x128xf32> to vector<1x16x128xf32>
    tpu.vector_store %arg5[%c0_6, %c0_7, %c0_8], %22 {strides = array<i32>} : memref<4x16x128xf32, #tpu.memory_space<vmem>>, vector<1x16x128xf32>,
    %c1_i32 = arith.constant 1 : i32
    %23 = arith.addi %0, %c1_i32 : i32
    %cst_9 = arith.constant 0.000000e+00 : f32
    %24 = vector.broadcast %cst_9 : f32 to vector<16x128xf32>
    %25 = vector.broadcast %23 : i32 to vector<16x1xi32>
    %26 = arith.cmpi eq, %2, %25 : vector<16x1xi32>
    %c0_10 = arith.constant 0 : index
    %c0_11 = arith.constant 0 : index
    %c0_12 = arith.constant 0 : index
    %27 = vector.load %arg4[%c0_10, %c0_11, %c0_12] : memref<2x16x128xf32, #tpu.memory_space<vmem>>, vector<1x16x128xf32>
    %28 = vector.shape_cast %27 : vector<1x16x128xf32> to vector<16x128xf32>
    %29 = vector.shape_cast %26 : vector<16x1xi1> to vector<16x1xi1>
    %30 = vector.broadcast %29 : vector<16x1xi1> to vector<16x128xi1>
    %31 = arith.select %30, %28, %24 : vector<16x128xi1>, vector<16x128xf32>
    %32 = vector.broadcast %23 : i32 to vector<16x1xi32>
    %33 = arith.cmpi eq, %3, %32 : vector<16x1xi32>
    %c1_13 = arith.constant 1 : index
    %c0_14 = arith.constant 0 : index
    %c0_15 = arith.constant 0 : index
    %34 = vector.load %arg4[%c1_13, %c0_14, %c0_15] : memref<2x16x128xf32, #tpu.memory_space<vmem>>, vector<1x16x128xf32>
    %35 = vector.shape_cast %34 : vector<1x16x128xf32> to vector<16x128xf32>
    %36 = vector.shape_cast %33 : vector<16x1xi1> to vector<16x1xi1>
    %37 = vector.broadcast %36 : vector<16x1xi1> to vector<16x128xi1>
    %38 = arith.select %37, %35, %31 : vector<16x128xi1>, vector<16x128xf32>
    %c1_16 = arith.constant 1 : index
    %c0_17 = arith.constant 0 : index
    %c0_18 = arith.constant 0 : index
    %39 = vector.load %arg5[%c1_16, %c0_17, %c0_18] : memref<4x16x128xf32, #tpu.memory_space<vmem>>, vector<1x16x128xf32>
    %40 = vector.shape_cast %39 : vector<1x16x128xf32> to vector<16x128xf32>
    %41 = vector.shape_cast %38 : vector<16x128xf32> to vector<1x16x128xf32>
    tpu.vector_store %arg5[%c1_16, %c0_17, %c0_18], %41 {strides = array<i32>} : memref<4x16x128xf32, #tpu.memory_space<vmem>>, vector<1x16x128xf32>,
    %c2_i32 = arith.constant 2 : i32
    %42 = arith.addi %0, %c2_i32 : i32
    %cst_19 = arith.constant 0.000000e+00 : f32
    %43 = vector.broadcast %cst_19 : f32 to vector<16x128xf32>
    %44 = vector.broadcast %42 : i32 to vector<16x1xi32>
    %45 = arith.cmpi eq, %2, %44 : vector<16x1xi32>
    %c0_20 = arith.constant 0 : index
    %c0_21 = arith.constant 0 : index
    %c0_22 = arith.constant 0 : index
    %46 = vector.load %arg4[%c0_20, %c0_21, %c0_22] : memref<2x16x128xf32, #tpu.memory_space<vmem>>, vector<1x16x128xf32>
    %47 = vector.shape_cast %46 : vector<1x16x128xf32> to vector<16x128xf32>
    %48 = vector.shape_cast %45 : vector<16x1xi1> to vector<16x1xi1>
    %49 = vector.broadcast %48 : vector<16x1xi1> to vector<16x128xi1>
    %50 = arith.select %49, %47, %43 : vector<16x128xi1>, vector<16x128xf32>
    %51 = vector.broadcast %42 : i32 to vector<16x1xi32>
    %52 = arith.cmpi eq, %3, %51 : vector<16x1xi32>
    %c1_23 = arith.constant 1 : index
    %c0_24 = arith.constant 0 : index
    %c0_25 = arith.constant 0 : index
    %53 = vector.load %arg4[%c1_23, %c0_24, %c0_25] : memref<2x16x128xf32, #tpu.memory_space<vmem>>, vector<1x16x128xf32>
    %54 = vector.shape_cast %53 : vector<1x16x128xf32> to vector<16x128xf32>
    %55 = vector.shape_cast %52 : vector<16x1xi1> to vector<16x1xi1>
    %56 = vector.broadcast %55 : vector<16x1xi1> to vector<16x128xi1>
    %57 = arith.select %56, %54, %50 : vector<16x128xi1>, vector<16x128xf32>
    %c2 = arith.constant 2 : index
    %c0_26 = arith.constant 0 : index
    %c0_27 = arith.constant 0 : index
    %58 = vector.load %arg5[%c2, %c0_26, %c0_27] : memref<4x16x128xf32, #tpu.memory_space<vmem>>, vector<1x16x128xf32>
    %59 = vector.shape_cast %58 : vector<1x16x128xf32> to vector<16x128xf32>
    %60 = vector.shape_cast %57 : vector<16x128xf32> to vector<1x16x128xf32>
    tpu.vector_store %arg5[%c2, %c0_26, %c0_27], %60 {strides = array<i32>} : memref<4x16x128xf32, #tpu.memory_space<vmem>>, vector<1x16x128xf32>,
    %c3_i32 = arith.constant 3 : i32
    %61 = arith.addi %0, %c3_i32 : i32
    %cst_28 = arith.constant 0.000000e+00 : f32
    %62 = vector.broadcast %cst_28 : f32 to vector<16x128xf32>
    %63 = vector.broadcast %61 : i32 to vector<16x1xi32>
    %64 = arith.cmpi eq, %2, %63 : vector<16x1xi32>
    %c0_29 = arith.constant 0 : index
    %c0_30 = arith.constant 0 : index
    %c0_31 = arith.constant 0 : index
    %65 = vector.load %arg4[%c0_29, %c0_30, %c0_31] : memref<2x16x128xf32, #tpu.memory_space<vmem>>, vector<1x16x128xf32>
    %66 = vector.shape_cast %65 : vector<1x16x128xf32> to vector<16x128xf32>
    %67 = vector.shape_cast %64 : vector<16x1xi1> to vector<16x1xi1>
    %68 = vector.broadcast %67 : vector<16x1xi1> to vector<16x128xi1>
    %69 = arith.select %68, %66, %62 : vector<16x128xi1>, vector<16x128xf32>
    %70 = vector.broadcast %61 : i32 to vector<16x1xi32>
    %71 = arith.cmpi eq, %3, %70 : vector<16x1xi32>
    %c1_32 = arith.constant 1 : index
    %c0_33 = arith.constant 0 : index
    %c0_34 = arith.constant 0 : index
    %72 = vector.load %arg4[%c1_32, %c0_33, %c0_34] : memref<2x16x128xf32, #tpu.memory_space<vmem>>, vector<1x16x128xf32>
    %73 = vector.shape_cast %72 : vector<1x16x128xf32> to vector<16x128xf32>
    %74 = vector.shape_cast %71 : vector<16x1xi1> to vector<16x1xi1>
    %75 = vector.broadcast %74 : vector<16x1xi1> to vector<16x128xi1>
    %76 = arith.select %75, %73, %69 : vector<16x128xi1>, vector<16x128xf32>
    %c3 = arith.constant 3 : index
    %c0_35 = arith.constant 0 : index
    %c0_36 = arith.constant 0 : index
    %77 = vector.load %arg5[%c3, %c0_35, %c0_36] : memref<4x16x128xf32, #tpu.memory_space<vmem>>, vector<1x16x128xf32>
    %78 = vector.shape_cast %77 : vector<1x16x128xf32> to vector<16x128xf32>
    %79 = vector.shape_cast %76 : vector<16x128xf32> to vector<1x16x128xf32>
    tpu.vector_store %arg5[%c3, %c0_35, %c0_36], %79 {strides = array<i32>} : memref<4x16x128xf32, #tpu.memory_space<vmem>>, vector<1x16x128xf32>,
    return
  }
  func.func @transform_0(%arg0: i32, %arg1: i32, %arg2: i32) -> (i32, i32) {
    %c0_i32 = arith.constant 0 : i32
    %c0_i32_0 = arith.constant 0 : i32
    return %arg0, %c0_i32 : i32, i32
  }
  func.func @transform_1(%arg0: i32, %arg1: i32, %arg2: i32) -> (i32, i32, i32) {
    %c0_i32 = arith.constant 0 : i32
    %c0_i32_0 = arith.constant 0 : i32
    return %c0_i32, %arg0, %arg1 : i32, i32, i32
  }
  func.func @transform_2(%arg0: i32, %arg1: i32, %arg2: i32) -> (i32, i32, i32) {
    %c0_i32 = arith.constant 0 : i32
    return %arg2, %arg0, %arg1 : i32, i32, i32
  }
}

</mosaic_0001>

<llo_original>
// kernel: tpu_custom_call.1
$region0: #{tpu_custom_call.1}
  #allocation0 [shape = 'u32[]', space=smem, size = 0x4, offset = 0x4, fixed_abs, tag = 'smem constant byte address 0x4 - core index']
  #allocation1 [shape = 'u32[144,128]{1,0:T(1,128)}', space=vmem, size = 0x12000, scoped, tag = 'internal scratch']
  %s0 = inlined_call_operand.vmem [shape: s32[16,2], index: 0, kind: input, shape index: {}]
  %s1 = inlined_call_operand.hbm [shape: f32[2,16,128], index: 1, kind: input, shape index: {}]
  %s2 = inlined_call_operand.hbm [shape: f32[4,16,128], index: 2, kind: output, shape index: {}]
  %s3 = sld [smem:[#allocation0]]
  $region22: #{tpu_custom_call.1} parent=0
    _
  %s5 = ssub.s32 1, %s3
  %s6 = scalar_select 0, %s5, %s3
  $region1: #{tpu_custom_call.1} parent=0
    #allocation2 [shape = 'u8[16384]{0}', space=vmem, size = 0x4000, scoped, tag = 'input window, operand 1, single buffered']
    #allocation3 [shape = 's32[1]{0}', space=sflag, size = 0x4, scoped, tag = 'scoped memory for tpu_custom_call.1']
    #allocation4 [shape = 's32[1]{0}', space=sflag, size = 0x4, scoped, tag = 'scoped memory for tpu_custom_call.1']
    #allocation5 [shape = 'u8[32768]{0}', space=vmem, size = 0x8000, scoped, tag = 'output window, operand 0, single buffered']
    %7 = vsyncpa [#allocation3], 0
    %8 = vsyncpa [#allocation4], 0
    // Predicated region
    $region2: #{tpu_custom_call.1} parent=1 // pred_check
      _
    $region3: #{tpu_custom_call.1} parent=1 // pred_check_branch
      %10 = sbr.rel (0) target = $region5
    $region4: #{tpu_custom_call.1} parent=1 // pred_region
      _
    $region5: #{tpu_custom_call.1} parent=1 // pred_fallthru
      _
    // Predicated region
    $region6: #{tpu_custom_call.1} parent=1 // pred_check
      _
    $region7: #{tpu_custom_call.1} parent=1 // pred_check_branch
      %12 = sbr.rel (0) target = $region9
    $region8: #{tpu_custom_call.1} parent=1 // pred_region
      %s14 = ssub.s32 512, 512
      %15 = vsyncadd [#allocation3], %s14
      %s16 = sshll.u32 [#allocation2], 4
      %s17 = int_to_ptr.vmem [resolvable:$true] %s16
      %22 = dma.hbm_to_vmem [thread:$0]  %s1, 512, %s17, [#allocation3], 128, 128, 8
    $region9: #{tpu_custom_call.1} parent=1 // pred_fallthru
      _
    // Predicated region
    $region10: #{tpu_custom_call.1} parent=1 // pred_check
      _
    $region11: #{tpu_custom_call.1} parent=1 // pred_check_branch
      %24 = sbr.rel (0) target = $region13
    $region12: #{tpu_custom_call.1} parent=1 // pred_region
      %25 = dma.done [#allocation3], 512
    $region13: #{tpu_custom_call.1} parent=1 // pred_fallthru
      _
    %s26 = smul.u32 0, 4
    %v27 = vld [vmem:[%s0] sm:$0xff]
    %v28 = vld [vmem:[%s0 + $0x8] sm:$0xff]
    %v29 = vstv %s26
    %vm30 = vcmp.eq.s32.totalorder %v27, %v29
    %vm31 = vcmp.eq.s32.totalorder %v28, %v29
    %v32 = vld [vmem:[#allocation2] sm:$0xff]
    %v33 = vld [vmem:[#allocation2 + $0x8] sm:$0xff]
    %v34 = vsel %vm30, 1, 0
    %v35 = vsel %vm31, 1, 0
    %36 = vset.pattern.permute.xlu0 0
    %37 = vperm.xlu0 %36, %v34
    %v38 = vpop.permute.xlu0 %37
    %39 = vset.pattern.permute.xlu0 0
    %40 = vperm.xlu0 %39, %v35
    %v41 = vpop.permute.xlu0 %40
    %vm42 = vcmp.eq.s32.totalorder %v38, 1
    %vm43 = vcmp.eq.s32.totalorder %v41, 1
    %v44 = vsel %vm42, %v32, 0.0
    %v45 = vsel %vm43, %v33, 0.0
    %s46 = scalar_lea.vmem [#allocation2], 16
    %v47 = vld [vmem:[%s46] sm:$0xff]
    %v48 = vld [vmem:[%s46 + $0x8] sm:$0xff]
    %49 = vset.pattern.permute.xlu0 1
    %50 = vperm.xlu0 %49, %v34
    %v51 = vpop.permute.xlu0 %50
    %52 = vset.pattern.permute.xlu0 1
    %53 = vperm.xlu0 %52, %v35
    %v54 = vpop.permute.xlu0 %53
    %vm55 = vcmp.eq.s32.totalorder %v51, 1
    %vm56 = vcmp.eq.s32.totalorder %v54, 1
    %v57 = vsel %vm55, %v47, %v44
    %v58 = vsel %vm56, %v48, %v45
    %59 = vst [vmem:[#allocation5] sm:$0xff] %v57
    %60 = vst [vmem:[#allocation5 + $0x8] sm:$0xff] %v58
    %s61 = sadd.s32 %s26, 1
    %v62 = vstv %s61
    %vm63 = vcmp.eq.s32.totalorder %v27, %v62
    %vm64 = vcmp.eq.s32.totalorder %v28, %v62
    %v65 = vld [vmem:[#allocation2] sm:$0xff]
    %v66 = vld [vmem:[#allocation2 + $0x8] sm:$0xff]
    %v67 = vsel %vm63, 1, 0
    %v68 = vsel %vm64, 1, 0
    %69 = vset.pattern.permute.xlu0 0
    %70 = vperm.xlu0 %69, %v67
    %v71 = vpop.permute.xlu0 %70
    %72 = vset.pattern.permute.xlu0 0
    %73 = vperm.xlu0 %72, %v68
    %v74 = vpop.permute.xlu0 %73
    %vm75 = vcmp.eq.s32.totalorder %v71, 1
    %vm76 = vcmp.eq.s32.totalorder %v74, 1
    %v77 = vsel %vm75, %v65, 0.0
    %v78 = vsel %vm76, %v66, 0.0
    %v79 = vld [vmem:[%s46] sm:$0xff]
    %v80 = vld [vmem:[%s46 + $0x8] sm:$0xff]
    %81 = vset.pattern.permute.xlu0 1
    %82 = vperm.xlu0 %81, %v67
    %v83 = vpop.permute.xlu0 %82
    %84 = vset.pattern.permute.xlu0 1
    %85 = vperm.xlu0 %84, %v68
    %v86 = vpop.permute.xlu0 %85
    %vm87 = vcmp.eq.s32.totalorder %v83, 1
    %vm88 = vcmp.eq.s32.totalorder %v86, 1
    %v89 = vsel %vm87, %v79, %v77
    %v90 = vsel %vm88, %v80, %v78
    %s91 = scalar_lea.vmem [#allocation5], 16
    %92 = vst [vmem:[%s91] sm:$0xff] %v89
    %93 = vst [vmem:[%s91 + $0x8] sm:$0xff] %v90
    %s94 = sadd.s32 %s26, 2
    %v95 = vstv %s94
    %vm96 = vcmp.eq.s32.totalorder %v27, %v95
    %vm97 = vcmp.eq.s32.totalorder %v28, %v95
    %v98 = vld [vmem:[#allocation2] sm:$0xff]
    %v99 = vld [vmem:[#allocation2 + $0x8] sm:$0xff]
    %v100 = vsel %vm96, 1, 0
    %v101 = vsel %vm97, 1, 0
    %102 = vset.pattern.permute.xlu0 0
    %103 = vperm.xlu0 %102, %v100
    %v104 = vpop.permute.xlu0 %103
    %105 = vset.pattern.permute.xlu0 0
    %106 = vperm.xlu0 %105, %v101
    %v107 = vpop.permute.xlu0 %106
    %vm108 = vcmp.eq.s32.totalorder %v104, 1
    %vm109 = vcmp.eq.s32.totalorder %v107, 1
    %v110 = vsel %vm108, %v98, 0.0
    %v111 = vsel %vm109, %v99, 0.0
    %v112 = vld [vmem:[%s46] sm:$0xff]
    %v113 = vld [vmem:[%s46 + $0x8] sm:$0xff]
    %114 = vset.pattern.permute.xlu0 1
    %115 = vperm.xlu0 %114, %v100
    %v116 = vpop.permute.xlu0 %115
    %117 = vset.pattern.permute.xlu0 1
    %118 = vperm.xlu0 %117, %v101
    %v119 = vpop.permute.xlu0 %118
    %vm120 = vcmp.eq.s32.totalorder %v116, 1
    %vm121 = vcmp.eq.s32.totalorder %v119, 1
    %v122 = vsel %vm120, %v112, %v110
    %v123 = vsel %vm121, %v113, %v111
    %s124 = scalar_lea.vmem [#allocation5], 32
    %125 = vst [vmem:[%s124] sm:$0xff] %v122
    %126 = vst [vmem:[%s124 + $0x8] sm:$0xff] %v123
    %s127 = sadd.s32 %s26, 3
    %v128 = vstv %s127
    %vm129 = vcmp.eq.s32.totalorder %v27, %v128
    %vm130 = vcmp.eq.s32.totalorder %v28, %v128
    %v131 = vld [vmem:[#allocation2] sm:$0xff]
    %v132 = vld [vmem:[#allocation2 + $0x8] sm:$0xff]
    %v133 = vsel %vm129, 1, 0
    %v134 = vsel %vm130, 1, 0
    %135 = vset.pattern.permute.xlu0 0
    %136 = vperm.xlu0 %135, %v133
    %v137 = vpop.permute.xlu0 %136
    %138 = vset.pattern.permute.xlu0 0
    %139 = vperm.xlu0 %138, %v134
    %v140 = vpop.permute.xlu0 %139
    %vm141 = vcmp.eq.s32.totalorder %v137, 1
    %vm142 = vcmp.eq.s32.totalorder %v140, 1
    %v143 = vsel %vm141, %v131, 0.0
    %v144 = vsel %vm142, %v132, 0.0
    %v145 = vld [vmem:[%s46] sm:$0xff]
    %v146 = vld [vmem:[%s46 + $0x8] sm:$0xff]
    %147 = vset.pattern.permute.xlu0 1
    %148 = vperm.xlu0 %147, %v133
    %v149 = vpop.permute.xlu0 %148
    %150 = vset.pattern.permute.xlu0 1
    %151 = vperm.xlu0 %150, %v134
    %v152 = vpop.permute.xlu0 %151
    %vm153 = vcmp.eq.s32.totalorder %v149, 1
    %vm154 = vcmp.eq.s32.totalorder %v152, 1
    %v155 = vsel %vm153, %v145, %v143
    %v156 = vsel %vm154, %v146, %v144
    %s157 = scalar_lea.vmem [#allocation5], 48
    %158 = vst [vmem:[%s157] sm:$0xff] %v155
    %159 = vst [vmem:[%s157 + $0x8] sm:$0xff] %v156
    // Predicated region
    $region14: #{tpu_custom_call.1} parent=1 // pred_check
      _
    $region15: #{tpu_custom_call.1} parent=1 // pred_check_branch
      %161 = sbr.rel (0) target = $region17
    $region16: #{tpu_custom_call.1} parent=1 // pred_region
      %s163 = ssub.s32 1024, 1024
      %164 = vsyncadd [#allocation4], %s163
      %s165 = sshll.u32 [#allocation5], 4
      %s166 = int_to_ptr.vmem [resolvable:$true] %s165
      %171 = dma.vmem_to_hbm [thread:$0]  %s166, 1024, %s2, [#allocation4], 128, 128, 8
    $region17: #{tpu_custom_call.1} parent=1 // pred_fallthru
      _
    // Predicated region
    $region18: #{tpu_custom_call.1} parent=1 // pred_check
      _
    $region19: #{tpu_custom_call.1} parent=1 // pred_check_branch
      %173 = sbr.rel (0) target = $region21
    $region20: #{tpu_custom_call.1} parent=1 // pred_region
      %174 = dma.done [#allocation4], 1024
    $region21: #{tpu_custom_call.1} parent=1 // pred_fallthru
      _
    %175 = vsyncpa [#allocation3], 1
    %176 = vsyncpa [#allocation4], 1

</llo_original>
